<compile_context>
chip_gen: v7x
topology: tpu7x:2x2x1
jax: 0.10.0
libtpu: 0.0.40
codegen_flags: <defaults>
</compile_context>

<pallas_src>
import functools
import math

import jax
import jax.numpy as jnp
from jax.experimental import pallas as pl
from jax.experimental.pallas import tpu as pltpu


# ----------------------------------------------------------------------------
# Tiled linear kernel: y = x @ w_t + b   (w_t already transposed to [in, out])
# x, w_t are bf16; accumulation is f32; bias is f32; output dtype is configurable.
# ----------------------------------------------------------------------------
def _linear_kernel(x_ref, w_ref, b_ref, o_ref, acc_ref):
    k_step = pl.program_id(2)

    @pl.when(k_step == 0)
    def _():
        acc_ref[...] = jnp.zeros_like(acc_ref)

    # bf16 MXU operands (already bf16 at rest), f32 accumulation.
    acc_ref[...] += jnp.dot(x_ref[...], w_ref[...],
                            preferred_element_type=jnp.float32)

    @pl.when(k_step == pl.num_programs(2) - 1)
    def _():
        o_ref[...] = (acc_ref[...] + b_ref[...]).astype(o_ref.dtype)


def _pick_tile(dim, target, align):
    """Largest tile <= target that divides dim and respects TPU tiling alignment;
    falls back to the full dimension (always legal for BlockSpec)."""
    if dim <= target:
        return dim
    t = (target // align) * align
    while t >= align:
        if dim % t == 0:
            return t
        t -= align
    return dim


def linear(x2d, w_t, b, *, out_dtype=jnp.bfloat16, tm=512, tn=512, tk=512):
    """x2d: (M, K) bf16, w_t: (K, N) bf16, b: (N,) f32 -> (M, N) out_dtype."""
    M, K = x2d.shape
    K2, N = w_t.shape
    assert K == K2
    tm = _pick_tile(M, tm, 8)
    tn = _pick_tile(N, tn, 128)
    tk = _pick_tile(K, tk, 128)
    grid = (M // tm, N // tn, K // tk)
    # TODO(synk): if profiling shows exposed DMA on the weight stream (tiny M),
    # set pipeline_mode=pl.Buffered(3) on the weight BlockSpec.
    return pl.pallas_call(
        _linear_kernel,
        out_shape=jax.ShapeDtypeStruct((M, N), out_dtype),
        grid_spec=pltpu.PrefetchScalarGridSpec(
            num_scalar_prefetch=0,
            grid=grid,
            in_specs=[
                pl.BlockSpec((tm, tk), lambda i, j, k: (i, k)),
                pl.BlockSpec((tk, tn), lambda i, j, k: (k, j)),
                pl.BlockSpec((1, tn), lambda i, j, k: (0, j)),
            ],
            out_specs=pl.BlockSpec((tm, tn), lambda i, j, k: (i, j)),
            scratch_shapes=[pltpu.VMEM((tm, tn), jnp.float32)],
        ),
        compiler_params=pltpu.CompilerParams(
            dimension_semantics=("parallel", "parallel", "arbitrary"),
            vmem_limit_bytes=32 * 1024 * 1024),
    )(x2d, w_t, b.reshape(1, N))


# ----------------------------------------------------------------------------
# Attention: one grid step per batch, heads handled with static column slices
# (no stack / concat); per-head result written straight into o_ref columns.
# ----------------------------------------------------------------------------
def _attention_heads(q, k, v, o_ref, *, num_heads, d_k):
    """q: (Sq, D) bf16 (1/sqrt(d_k) pre-folded), k/v: (Sk, D) bf16.
    Writes each head's (Sq, d_k) output into o_ref[0, :, h*d_k:(h+1)*d_k]."""
    for h in range(num_heads):
        lo, hi = h * d_k, (h + 1) * d_k
        qh = q[:, lo:hi]                                      # (Sq, d_k) bf16
        kh = k[:, lo:hi]                                      # (Sk, d_k) bf16
        vh = v[:, lo:hi]                                      # (Sk, d_k) bf16

        # QK^T on the MXU: bf16 operands, f32 accumulation.
        s = jax.lax.dot_general(qh, kh, (((1,), (1,)), ((), ())),
                                preferred_element_type=jnp.float32)  # (Sq, Sk)

        # Online-softmax-style numerics in f32 (VPU).
        m = jnp.max(s, axis=-1, keepdims=True)
        p = jnp.exp(s - m)
        denom = jnp.sum(p, axis=-1, keepdims=True)

        # PV matmul on un-normalized probabilities, then normalize the small
        # (Sq, d_k) result (Sk/d_k fewer VPU multiplies than normalizing p).
        out = jnp.dot(p.astype(jnp.bfloat16), vh,
                      preferred_element_type=jnp.float32)     # (Sq, d_k)
        out = out * pl.reciprocal(denom, approx=True)
        # TODO(synk): training-mode dropout on the probabilities not implemented.

        o_ref[0, :, lo:hi] = out.astype(o_ref.dtype)


def _self_attn_kernel(qkv_ref, o_ref, *, num_heads, d_model):
    qkv = qkv_ref[0]                                          # (S, 3D) bf16
    d_k = d_model // num_heads
    q = qkv[:, 0:d_model]
    k = qkv[:, d_model:2 * d_model]
    v = qkv[:, 2 * d_model:3 * d_model]
    _attention_heads(q, k, v, o_ref, num_heads=num_heads, d_k=d_k)


def _cross_attn_kernel(q_ref, k_ref, v_ref, o_ref, *, num_heads, d_k):
    _attention_heads(q_ref[0], k_ref[0], v_ref[0], o_ref,
                     num_heads=num_heads, d_k=d_k)


def self_attention(qkv, num_heads, d_model):
    """qkv: (B, S, 3*D) bf16 fused projections -> (B, S, D) bf16."""
    B, S, three_d = qkv.shape
    kernel = functools.partial(_self_attn_kernel, num_heads=num_heads,
                               d_model=d_model)
    return pl.pallas_call(
        kernel,
        out_shape=jax.ShapeDtypeStruct((B, S, d_model), jnp.bfloat16),
        grid=(B,),
        in_specs=[pl.BlockSpec((1, S, three_d), lambda b: (b, 0, 0))],
        out_specs=pl.BlockSpec((1, S, d_model), lambda b: (b, 0, 0)),
        compiler_params=pltpu.CompilerParams(
            dimension_semantics=("parallel",),
            vmem_limit_bytes=48 * 1024 * 1024),
    )(qkv)


def cross_attention(q, k, v, num_heads):
    """q: (B, Sq, D) bf16, k/v: (B, Sk, D) bf16 -> (B, Sq, D) bf16."""
    B, Sq, D = q.shape
    Sk = k.shape[1]
    d_k = D // num_heads
    kernel = functools.partial(_cross_attn_kernel, num_heads=num_heads, d_k=d_k)
    return pl.pallas_call(
        kernel,
        out_shape=jax.ShapeDtypeStruct((B, Sq, D), jnp.bfloat16),
        grid=(B,),
        in_specs=[
            pl.BlockSpec((1, Sq, D), lambda b: (b, 0, 0)),
            pl.BlockSpec((1, Sk, D), lambda b: (b, 0, 0)),
            pl.BlockSpec((1, Sk, D), lambda b: (b, 0, 0)),
        ],
        out_specs=pl.BlockSpec((1, Sq, D), lambda b: (b, 0, 0)),
        compiler_params=pltpu.CompilerParams(
            dimension_semantics=("parallel",),
            vmem_limit_bytes=48 * 1024 * 1024),
    )(q, k, v)


# ----------------------------------------------------------------------------
# Full forward pass (matches PyTorch MultiHeadAttention.forward, mask=None)
# ----------------------------------------------------------------------------
def mha_forward_self(params, x, num_heads):
    """Self-attention fast path: single fused bf16 (D, 3D) QKV projection."""
    B, S, D = x.shape
    x_bf = x.reshape(B * S, D).astype(jnp.bfloat16)
    qkv = linear(x_bf, params["w_qkv_t"], params["w_qkv_b"],
                 out_dtype=jnp.bfloat16)
    attn = self_attention(qkv.reshape(B, S, 3 * D), num_heads, D)
    out = linear(attn.reshape(B * S, D), params["w_o_t"], params["w_o_b"],
                 out_dtype=x.dtype)
    return out.reshape(B, S, D)


def mha_forward(params, query, key, value, num_heads):
    B, Sq, D = query.shape
    if query is key and key is value:
        return mha_forward_self(params, query, num_heads)
    Sk = key.shape[1]
    q_bf = query.reshape(B * Sq, D).astype(jnp.bfloat16)
    k_bf = key.reshape(B * Sk, D).astype(jnp.bfloat16)
    v_bf = value.reshape(B * Sk, D).astype(jnp.bfloat16)
    # w_q_t / w_q_b already carry the 1/sqrt(d_k) factor.
    q = linear(q_bf, params["w_q_t"], params["w_q_b"]).reshape(B, Sq, D)
    k = linear(k_bf, params["w_k_t"], params["w_k_b"]).reshape(B, Sk, D)
    v = linear(v_bf, params["w_v_t"], params["w_v_b"]).reshape(B, Sk, D)
    attn = cross_attention(q, k, v, num_heads)
    out = linear(attn.reshape(B * Sq, D), params["w_o_t"], params["w_o_b"],
                 out_dtype=query.dtype)
    return out.reshape(B, Sq, D)


def init_params(key, d_model):
    """Mirror nn.Linear(d_model, d_model) x4 in f32. Torch weight is (out, in);
    we store the transpose (in, out). These f32 params feed the reference."""
    params = {}
    bound = 1.0 / math.sqrt(d_model)
    for name in ("w_q", "w_k", "w_v", "w_o"):
        key, kw, kb = jax.random.split(key, 3)
        w = jax.random.uniform(kw, (d_model, d_model), jnp.float32, -bound, bound)
        b = jax.random.uniform(kb, (d_model,), jnp.float32, -bound, bound)
        params[name + "_t"] = w.T
        params[name + "_b"] = b
    return params


def prepare_kernel_params(raw, d_model, num_heads):
    """Kernel-side params: weights in bf16, 1/sqrt(d_k) folded into the Q weight
    and Q bias, Q/K/V fused into one (D, 3D) weight + (3D,) bias. Biases stay f32
    (added on the f32 accumulator)."""
    d_k = d_model // num_heads
    scale = 1.0 / math.sqrt(d_k)
    p = {
        "w_q_t": (raw["w_q_t"] * scale).astype(jnp.bfloat16),
        "w_q_b": raw["w_q_b"] * scale,
        "w_k_t": raw["w_k_t"].astype(jnp.bfloat16),
        "w_k_b": raw["w_k_b"],
        "w_v_t": raw["w_v_t"].astype(jnp.bfloat16),
        "w_v_b": raw["w_v_b"],
        "w_o_t": raw["w_o_t"].astype(jnp.bfloat16),
        "w_o_b": raw["w_o_b"],
    }
    p["w_qkv_t"] = jnp.concatenate([p["w_q_t"], p["w_k_t"], p["w_v_t"]], axis=1)
    p["w_qkv_b"] = jnp.concatenate([p["w_q_b"], p["w_k_b"], p["w_v_b"]], axis=0)
    return p


# ----------------------------------------------------------------------------
# Pure-JAX f32 reference (faithful to the PyTorch forward) for correctness.
# ----------------------------------------------------------------------------
def mha_reference(params, query, key, value, num_heads):
    B, Sq, D = query.shape
    d_k = D // num_heads

    def proj(x, name):
        S = x.shape[1]
        y = x.reshape(B * S, D) @ params[name + "_t"] + params[name + "_b"]
        return y.reshape(B, S, num_heads, d_k).transpose(0, 2, 1, 3)

    Q, K, V = proj(query, "w_q"), proj(key, "w_k"), proj(value, "w_v")
    scores = jnp.einsum("bhqd,bhkd->bhqk", Q, K) / math.sqrt(d_k)
    p = jax.nn.softmax(scores, axis=-1)
    attn = jnp.einsum("bhqk,bhkd->bhqd", p, V)
    attn = attn.transpose(0, 2, 1, 3).reshape(B * Sq, D)
    out = attn @ params["w_o_t"] + params["w_o_b"]
    return out.reshape(B, Sq, D)


if __name__ == "__main__":
    B, S, D, H = 2, 8, 32, 4

    root = jax.random.PRNGKey(0)
    kp, kx, kq, kk, kv = jax.random.split(root, 5)
    raw_params = init_params(kp, D)
    params = prepare_kernel_params(raw_params, D, H)

    # Self-attention (fused-QKV fast path).
    x = jax.random.normal(kx, (B, S, D), jnp.float32)
    out_self = jax.block_until_ready(mha_forward(params, x, x, x, H))
    ref_self = mha_reference(raw_params, x, x, x, H)
    assert out_self.shape == (B, S, D)
    # bf16 weights/activations + approx reciprocal -> relaxed tolerance vs f32 ref.
    assert jnp.allclose(out_self, ref_self, atol=4e-2, rtol=4e-2), \
        float(jnp.max(jnp.abs(out_self - ref_self)))

    # General path with distinct query / key / value tensors.
    query = jax.random.normal(kq, (B, S, D), jnp.float32)
    key = jax.random.normal(kk, (B, S, D), jnp.float32)
    value = jax.random.normal(kv, (B, S, D), jnp.float32)
    out_x = jax.block_until_ready(mha_forward(params, query, key, value, H))
    ref_x = mha_reference(raw_params, query, key, value, H)
    assert jnp.allclose(out_x, ref_x, atol=4e-2, rtol=4e-2), \
        float(jnp.max(jnp.abs(out_x - ref_x)))

    print("KERNEL_OK")
</pallas_src>

<mosaic_0001>
module attributes {stable_mosaic.version = 11 : i64} {
  func.func @_linear_kernel(%arg0: i32, %arg1: i32, %arg2: i32, %arg3: memref<16x32xbf16, #tpu.memory_space<vmem>>, %arg4: memref<32x96xbf16, #tpu.memory_space<vmem>>, %arg5: memref<1x96xf32, #tpu.memory_space<vmem>>, %arg6: memref<16x96xbf16, #tpu.memory_space<vmem>>, %arg7: memref<16x96xf32, #tpu.memory_space<vmem>>) attributes {dimension_semantics = [#tpu.dimension_semantics<parallel>, #tpu.dimension_semantics<parallel>, #tpu.dimension_semantics<arbitrary>], iteration_bounds = array<i64: 1, 1, 1>, scalar_prefetch = 0 : i64, scratch_operands = 1 : i64, tpu.core_type = #tpu.core_type<tc>, window_params = [{transform_indices = @transform_0, window_bounds = array<i64: 16, 32>}, {transform_indices = @transform_1, window_bounds = array<i64: 32, 96>}, {transform_indices = @transform_2, window_bounds = array<i64: 1, 96>}, {transform_indices = @transform_3, window_bounds = array<i64: 16, 96>}]} {
    %c0_i32 = arith.constant 0 : i32
    %0 = arith.cmpi eq, %arg2, %c0_i32 : i32
    %1 = arith.extui %0 : i1 to i32
    %c0_i32_0 = arith.constant 0 : i32
    %2 = arith.cmpi ne, %1, %c0_i32_0 : i32
    scf.if %2 {
      %cst_10 = arith.constant 0.000000e+00 : f32
      %12 = vector.broadcast %cst_10 : f32 to vector<16x96xf32>
      %c0_11 = arith.constant 0 : index
      %c0_12 = arith.constant 0 : index
      %13 = vector.load %arg7[%c0_11, %c0_12] : memref<16x96xf32, #tpu.memory_space<vmem>>, vector<16x96xf32>
      tpu.vector_store %arg7[%c0_11, %c0_12], %12 {strides = array<i32>} : memref<16x96xf32, #tpu.memory_space<vmem>>, vector<16x96xf32>,
    } else {
    }
    %c0 = arith.constant 0 : index
    %c0_1 = arith.constant 0 : index
    %3 = vector.load %arg7[%c0, %c0_1] : memref<16x96xf32, #tpu.memory_space<vmem>>, vector<16x96xf32>
    %c0_2 = arith.constant 0 : index
    %c0_3 = arith.constant 0 : index
    %4 = vector.load %arg3[%c0_2, %c0_3] : memref<16x32xbf16, #tpu.memory_space<vmem>>, vector<16x32xbf16>
    %c0_4 = arith.constant 0 : index
    %c0_5 = arith.constant 0 : index
    %5 = vector.load %arg4[%c0_4, %c0_5] : memref<32x96xbf16, #tpu.memory_space<vmem>>, vector<32x96xbf16>
    %cst = arith.constant dense<0.000000e+00> : vector<16x96xf32>
    %6 = tpu.matmul %4, %5, %cst {dimension_numbers = #tpu.dot_dimension_numbers<[1], [0], [0], [1], [0, 0, 1, 1], [], []>} : vector<16x32xbf16>, vector<32x96xbf16>, vector<16x96xf32> -> vector<16x96xf32>
    %7 = arith.addf %3, %6 : vector<16x96xf32>
    %c0_6 = arith.constant 0 : index
    %c0_7 = arith.constant 0 : index
    %8 = vector.load %arg7[%c0_6, %c0_7] : memref<16x96xf32, #tpu.memory_space<vmem>>, vector<16x96xf32>
    tpu.vector_store %arg7[%c0_6, %c0_7], %7 {strides = array<i32>} : memref<16x96xf32, #tpu.memory_space<vmem>>, vector<16x96xf32>,
    %c0_i32_8 = arith.constant 0 : i32
    %9 = arith.cmpi eq, %arg2, %c0_i32_8 : i32
    %10 = arith.extui %9 : i1 to i32
    %c0_i32_9 = arith.constant 0 : i32
    %11 = arith.cmpi ne, %10, %c0_i32_9 : i32
    scf.if %11 {
      %c0_10 = arith.constant 0 : index
      %c0_11 = arith.constant 0 : index
      %12 = vector.load %arg7[%c0_10, %c0_11] : memref<16x96xf32, #tpu.memory_space<vmem>>, vector<16x96xf32>
      %c0_12 = arith.constant 0 : index
      %c0_13 = arith.constant 0 : index
      %13 = vector.load %arg5[%c0_12, %c0_13] : memref<1x96xf32, #tpu.memory_space<vmem>>, vector<1x96xf32>
      %14 = vector.broadcast %13 : vector<1x96xf32> to vector<16x96xf32>
      %15 = arith.addf %12, %14 : vector<16x96xf32>
      %16 = arith.truncf %15 : vector<16x96xf32> to vector<16x96xbf16>
      %c0_14 = arith.constant 0 : index
      %c0_15 = arith.constant 0 : index
      %17 = vector.load %arg6[%c0_14, %c0_15] : memref<16x96xbf16, #tpu.memory_space<vmem>>, vector<16x96xbf16>
      tpu.vector_store %arg6[%c0_14, %c0_15], %16 {strides = array<i32>} : memref<16x96xbf16, #tpu.memory_space<vmem>>, vector<16x96xbf16>,
    } else {
    }
    return
  }
  func.func @transform_0(%arg0: i32, %arg1: i32, %arg2: i32) -> (i32, i32) {
    %c0_i32 = arith.constant 0 : i32
    return %arg0, %arg2 : i32, i32
  }
  func.func @transform_1(%arg0: i32, %arg1: i32, %arg2: i32) -> (i32, i32) {
    %c0_i32 = arith.constant 0 : i32
    return %arg2, %arg1 : i32, i32
  }
  func.func @transform_2(%arg0: i32, %arg1: i32, %arg2: i32) -> (i32, i32) {
    %c0_i32 = arith.constant 0 : i32
    %c0_i32_0 = arith.constant 0 : i32
    return %c0_i32, %arg1 : i32, i32
  }
  func.func @transform_3(%arg0: i32, %arg1: i32, %arg2: i32) -> (i32, i32) {
    %c0_i32 = arith.constant 0 : i32
    return %arg0, %arg1 : i32, i32
  }
}

</mosaic_0001>

<llo_original>
// kernel: tpu_custom_call.1
$region0: #{tpu_custom_call.1}
  #allocation0 [shape = 'u32[]', space=smem, size = 0x4, offset = 0x4, fixed_abs, tag = 'smem constant byte address 0x4 - core index']
  #allocation1 [shape = 'u32[144,128]{1,0:T(1,128)}', space=vmem, size = 0x12000, scoped, tag = 'internal scratch']
  #allocation2 [shape = 'f32[16,96]{1,0:T(8,128)}', space=vmem, size = 0x2000, scoped, tag = 'scratch operand']
  %s0 = inlined_call_operand.hbm [shape: bf16[16,32], index: 0, kind: input, shape index: {}]
  %s1 = inlined_call_operand.hbm [shape: bf16[32,96], index: 1, kind: input, shape index: {}]
  %s2 = inlined_call_operand.vmem [shape: f32[1,96], index: 2, kind: input, shape index: {}]
  %s3 = inlined_call_operand.hbm [shape: bf16[16,96], index: 3, kind: output, shape index: {}]
  %s4 = sld [smem:[#allocation0]]
  $region38: #{tpu_custom_call.1} parent=0
    _
  %s6 = ssub.s32 1, %s4
  %s7 = scalar_select 0, %s6, %s4
  $region1: #{tpu_custom_call.1} parent=0
    #allocation3 [shape = 'u8[4096]{0}', space=vmem, size = 0x1000, scoped, tag = 'input window, operand 0, single buffered']
    #allocation4 [shape = 's32[1]{0}', space=sflag, size = 0x4, scoped, tag = 'scoped memory for tpu_custom_call.1']
    #allocation5 [shape = 's32[1]{0}', space=sflag, size = 0x4, scoped, tag = 'scoped memory for tpu_custom_call.1']
    #allocation6 [shape = 'u8[8192]{0}', space=vmem, size = 0x2000, scoped, tag = 'input window, operand 1, single buffered']
    #allocation7 [shape = 's32[1]{0}', space=sflag, size = 0x4, scoped, tag = 'scoped memory for tpu_custom_call.1']
    #allocation8 [shape = 'u8[4096]{0}', space=vmem, size = 0x1000, scoped, tag = 'output window, operand 0, single buffered']
    %8 = vsyncpa [#allocation4], 0
    %9 = vsyncpa [#allocation7], 0
    %10 = vsyncpa [#allocation5], 0
    // Predicated region
    $region2: #{tpu_custom_call.1} parent=1 // pred_check
      _
    $region3: #{tpu_custom_call.1} parent=1 // pred_check_branch
      %12 = sbr.rel (0) target = $region5
    $region4: #{tpu_custom_call.1} parent=1 // pred_region
      %s14 = ssub.s32 128, 128
      %15 = vsyncadd [#allocation4], %s14
      %s16 = sshll.u32 [#allocation3], 4
      %s17 = int_to_ptr.vmem [resolvable:$true] %s16
      %22 = dma.hbm_to_vmem [thread:$0]  %s0, 128, %s17, [#allocation4], 64, 64, 4
    $region5: #{tpu_custom_call.1} parent=1 // pred_fallthru
      _
    // Predicated region
    $region6: #{tpu_custom_call.1} parent=1 // pred_check
      _
    $region7: #{tpu_custom_call.1} parent=1 // pred_check_branch
      %24 = sbr.rel (0) target = $region9
    $region8: #{tpu_custom_call.1} parent=1 // pred_region
      %s26 = ssub.s32 256, 256
      %27 = vsyncadd [#allocation7], %s26
      %s28 = sshll.u32 [#allocation6], 4
      %s29 = int_to_ptr.vmem [resolvable:$true] %s28
      %34 = dma.hbm_to_vmem [thread:$0]  %s1, 256, %s29, [#allocation7], 64, 64, 4
    $region9: #{tpu_custom_call.1} parent=1 // pred_fallthru
      _
    // Predicated region
    $region10: #{tpu_custom_call.1} parent=1 // pred_check
      _
    $region11: #{tpu_custom_call.1} parent=1 // pred_check_branch
      %36 = sbr.rel (0) target = $region13
    $region12: #{tpu_custom_call.1} parent=1 // pred_region
      _
    $region13: #{tpu_custom_call.1} parent=1 // pred_fallthru
      _
    // Predicated region
    $region14: #{tpu_custom_call.1} parent=1 // pred_check
      _
    $region15: #{tpu_custom_call.1} parent=1 // pred_check_branch
      %38 = sbr.rel (0) target = $region17
    $region16: #{tpu_custom_call.1} parent=1 // pred_region
      %39 = dma.done [#allocation4], 128
    $region17: #{tpu_custom_call.1} parent=1 // pred_fallthru
      _
    // Predicated region
    $region18: #{tpu_custom_call.1} parent=1 // pred_check
      _
    $region19: #{tpu_custom_call.1} parent=1 // pred_check_branch
      %41 = sbr.rel (0) target = $region21
    $region20: #{tpu_custom_call.1} parent=1 // pred_region
      %42 = dma.done [#allocation7], 256
    $region21: #{tpu_custom_call.1} parent=1 // pred_fallthru
      _
    %p44 = scmp.eq.s32.totalorder 0, 0
    // Predicated region
    $region22: #{tpu_custom_call.1} parent=1 // pred_check
      %p45 = pneg %p44
    $region23: #{tpu_custom_call.1} parent=1 // pred_check_branch
      %47 = sbr.rel (%p45) target = $region25
    $region24: #{tpu_custom_call.1} parent=1 // pred_region
      %vm48 = vcmask 785408
      %49 = vst.msk [vmem:[#allocation2] sm:$0xff] %vm48, 0.0
      %50 = vst.msk [vmem:[#allocation2 + $0x8] sm:$0xff] %vm48, 0.0
    $region25: #{tpu_custom_call.1} parent=1 // pred_fallthru
      _
    %v51 = vld [vmem:[#allocation2] sm:$0xff]
    %v52 = vld [vmem:[#allocation2 + $0x8] sm:$0xff]
    %v53 = vld [vmem:[#allocation3] sm:$0xf]
    %v54 = vld [vmem:[#allocation3 + $0x4] sm:$0xf]
    %v55 = vld [vmem:[#allocation6] sm:$0xf]
    %v56 = vld [vmem:[#allocation6 + $0x4] sm:$0xf]
    %v57 = vld [vmem:[#allocation6 + $0x8] sm:$0xf]
    %v58 = vld [vmem:[#allocation6 + $0xc] sm:$0xf]
    %v61 = vunpack.c.l.b16 %v53
    %v62 = vunpack.c.l.b16 %v54
    %v63 = vpack.c.b16 %v62, %v61
    %v68 = vunpack.c.l.b16 %v55
    %v69 = vunpack.c.l.b16 %v56
    %v70 = vunpack.c.l.b16 %v57
    %v71 = vunpack.c.l.b16 %v58
    %v72 = vpack.c.b16 %v69, %v68
    %v73 = vpack.c.b16 %v71, %v70
    %vm76 = vcmask 261120
    %v78 = vsel %vm76, %v63, 0
    %80 = vmatprep.subr.bf16.mxu0 0
    %81 = vmatpush1.bf16.msra.mxu0 %v72
    %82 = vmatprep.subr.bf16.mxu0 0
    %83 = vmatpush1.bf16.msra.mxu0 %v73
    %84 = vmatprep.subr.bf16.mxu0 0
    %85 = vmatpush1.bf16.msra.mxu0 0
    %86 = vmatprep.subr.bf16.mxu0 0
    %87 = vmatpush1.bf16.msra.mxu0 0
    %88 = vmatprep.subr.bf16.mxu0 0
    %89 = vmatpush1.bf16.msra.mxu0 0
    %90 = vmatprep.subr.bf16.mxu0 0
    %91 = vmatpush1.bf16.msra.mxu0 0
    %92 = vmatprep.subr.bf16.mxu0 0
    %93 = vmatpush1.bf16.msra.mxu0 0
    %94 = vmatprep.subr.bf16.mxu0 0
    %95 = vmatpush1.bf16.msra.mxu0 0
    %96 = vmatprep.subr.bf16.mxu0 0
    %97 = vmatpush1.bf16.msra.mxu0 0
    %98 = vmatprep.subr.bf16.mxu0 0
    %99 = vmatpush1.bf16.msra.mxu0 0
    %100 = vmatprep.subr.bf16.mxu0 0
    %101 = vmatpush1.bf16.msra.mxu0 0
    %102 = vmatprep.subr.bf16.mxu0 0
    %103 = vmatpush1.bf16.msra.mxu0 0
    %104 = vmatprep.subr.bf16.mxu0 0
    %105 = vmatpush1.bf16.msra.mxu0 0
    %106 = vmatprep.subr.bf16.mxu0 0
    %107 = vmatpush1.bf16.msra.mxu0 0
    %108 = vmatprep.subr.bf16.mxu0 0
    %109 = vmatpush1.bf16.msra.mxu0 0
    %110 = vmatprep.subr.bf16.mxu0 0
    %111 = vmatpush1.bf16.msra.mxu0 0
    %112 = vmatprep.mubr.bf16.mxu0 0
    %113 = vmatmul.mubr.bf16.gmra.mrb[0].mxu0 %v78
    %v114 = vpop.f32.mrb[0].mxu0
    %v115 = vadd.f32 0.0, %v114
    %v116 = vpop.f32.mrb[0].mxu0
    %v117 = vpop.f32.mrb[0].mxu0
    %v118 = vadd.f32 0.0, %v117
    %v119 = vpop.f32.mrb[0].mxu0
    %120 = vdwg.mxu0
    %v121 = vadd.f32 %v51, %v115
    %v122 = vadd.f32 %v52, %v118
    %vm123 = vcmask 785408
    %124 = vst.msk [vmem:[#allocation2] sm:$0xff] %vm123, %v121
    %125 = vst.msk [vmem:[#allocation2 + $0x8] sm:$0xff] %vm123, %v122
    // Predicated region
    $region26: #{tpu_custom_call.1} parent=1 // pred_check
      %p126 = pneg %p44
    $region27: #{tpu_custom_call.1} parent=1 // pred_check_branch
      %128 = sbr.rel (%p126) target = $region29
    $region28: #{tpu_custom_call.1} parent=1 // pred_region
      %v129 = vld [vmem:[#allocation2] sm:$0xff]
      %v130 = vld [vmem:[#allocation2 + $0x8] sm:$0xff]
      %v131 = vld [vmem:[%s2] sm:$0x1]
      %v133 = vlaneseq
      %v134 = vshrl.u32 %v133, 7
      %v135 = vsub.s32 0, %v134
      %v136 = vrot.slane %v131, %v135
      %v138 = vadd.f32 %v129, %v136
      %v139 = vadd.f32 %v130, %v136
      %v140 = vpack.c.bf16 %v139, %v138
      %v142 = vunpack.c.l.b16 %v140
      %v143 = vunpack.c.h.b16 %v140
      %v144 = vpack.c.b16 %v142, %v142
      %v145 = vpack.c.b16 %v143, %v143
      %vm148 = vcmask 781312
      %149 = vst.msk [vmem:[#allocation8] sm:$0xf] %vm148, %v144
      %150 = vst.msk [vmem:[#allocation8 + $0x4] sm:$0xf] %vm148, %v145
    $region29: #{tpu_custom_call.1} parent=1 // pred_fallthru
      _
    // Predicated region
    $region30: #{tpu_custom_call.1} parent=1 // pred_check
      _
    $region31: #{tpu_custom_call.1} parent=1 // pred_check_branch
      %152 = sbr.rel (0) target = $region33
    $region32: #{tpu_custom_call.1} parent=1 // pred_region
      %s154 = ssub.s32 128, 128
      %155 = vsyncadd [#allocation5], %s154
      %s156 = sshll.u32 [#allocation8], 4
      %s157 = int_to_ptr.vmem [resolvable:$true] %s156
      %162 = dma.vmem_to_hbm [thread:$0]  %s157, 128, %s3, [#allocation5], 64, 64, 4
    $region33: #{tpu_custom_call.1} parent=1 // pred_fallthru
      _
    // Predicated region
    $region34: #{tpu_custom_call.1} parent=1 // pred_check
      _
    $region35: #{tpu_custom_call.1} parent=1 // pred_check_branch
      %164 = sbr.rel (0) target = $region37
    $region36: #{tpu_custom_call.1} parent=1 // pred_region
      %165 = dma.done [#allocation5], 128
    $region37: #{tpu_custom_call.1} parent=1 // pred_fallthru
      _
    %166 = vsyncpa [#allocation4], 1
    %167 = vsyncpa [#allocation7], 1
    %168 = vsyncpa [#allocation5], 1

</llo_original>
